<compile_context>
chip_gen: v6e
topology: v6e:2x2x1
jax: 0.10.0
libtpu: 0.0.40
codegen_flags: <defaults>
</compile_context>

<pallas_src>
import functools
import math

import jax
import jax.numpy as jnp
from jax import lax
from jax.experimental import pallas as pl
from jax.experimental.pallas import tpu as pltpu

LANES = 128
MAX_TILE_ROWS = 4096   # (4096, 128) f32 = 2 MiB per input block.
# Note: could be raised to 8192 on v7x only (3.2 TB/s HBM makes per-step
# overhead relatively larger), but 4096 is safe on every generation.


def _cdiv(a, b):
    return (a + b - 1) // b


def _l1_sum_kernel(o_ref, t_ref, acc_ref, *, rows_b, tile_rows, num_tiles,
                   has_ragged):
    """Accumulate sum(|o - t|) of this (1, tile_rows, 128) tile into the
    resident (8, 128) per-batch partial-sum block."""
    i = pl.program_id(1)   # reduction axis ("arbitrary", innermost)

    @pl.when(i == 0)
    def _init():
        acc_ref[...] = jnp.zeros_like(acc_ref)

    def diff_tile():
        return jnp.abs(o_ref[0].astype(jnp.float32)
                       - t_ref[0].astype(jnp.float32))

    def fold_add(diff):
        # Fold (tile_rows, 128) onto the (8, 128) accumulator: free major-dim
        # reshape + VPU adds.  The single cross-lane reduce happens on the tiny
        # partials array in the wrapper.
        acc_ref[...] += jnp.sum(diff.reshape(tile_rows // 8, 8, LANES), axis=0)

    if not has_ragged:
        # Steady state: pure sub/abs/add, no mask work in the hot loop.
        fold_add(diff_tile())
    else:
        @pl.when(i < num_tiles - 1)
        def _full():
            fold_add(diff_tile())

        @pl.when(i == num_tiles - 1)
        def _last():
            # Last tile overhangs the array; OOB rows hold unspecified padding.
            # The select picks 0.0 for them (does not propagate NaN/Inf).
            d = diff_tile()
            row_ids = i * tile_rows + lax.broadcasted_iota(jnp.int32, d.shape, 0)
            fold_add(jnp.where(row_ids < rows_b, d, jnp.float32(0.0)))


def _l1_partial_sums(o3d, t3d, *, t_batch_stride):
    """Per-batch partial sums of |o - t|.

    o3d: (B, rows_b, 128).  t3d: (B * t_batch_stride, rows_b, 128); the target
    block for batch b is element b * t_batch_stride (this is how flows[:, 0]
    is selected without materializing the slice).
    Returns (B*8, 128) float32 partials (sum over all entries = total sum).
    Caller guarantees tile_rows := min(MAX_TILE_ROWS, rows_b) is a multiple of 8.
    """
    B, rows_b, lanes = o3d.shape
    assert lanes == LANES
    tile_rows = min(MAX_TILE_ROWS, rows_b)
    assert tile_rows % 8 == 0, (tile_rows, rows_b)
    num_tiles = _cdiv(rows_b, tile_rows)
    has_ragged = num_tiles * tile_rows != rows_b

    kernel = functools.partial(
        _l1_sum_kernel, rows_b=rows_b, tile_rows=tile_rows,
        num_tiles=num_tiles, has_ragged=has_ragged)

    elems = B * rows_b * LANES
    cost = pl.CostEstimate(
        flops=3 * elems,                       # sub + abs + accumulate
        transcendentals=0,
        bytes_accessed=(elems * (o3d.dtype.itemsize + t3d.dtype.itemsize)
                        + B * 8 * LANES * 4),
    )

    return pl.pallas_call(
        kernel,
        out_shape=jax.ShapeDtypeStruct((B * 8, LANES), jnp.float32),
        grid_spec=pltpu.PrefetchScalarGridSpec(
            num_scalar_prefetch=0,
            grid=(B, num_tiles),
            in_specs=[
                pl.BlockSpec((1, tile_rows, LANES), lambda b, i: (b, i, 0)),
                # Select n == 0 of batch b directly in the index_map.
                pl.BlockSpec((1, tile_rows, LANES),
                             lambda b, i: (b * t_batch_stride, i, 0)),
            ],
            out_specs=pl.BlockSpec((8, LANES), lambda b, i: (b, 0)),
        ),
        compiler_params=pltpu.CompilerParams(
            dimension_semantics=("parallel", "arbitrary"),
        ),
        cost_estimate=cost,
    )(o3d, t3d)


def l1_loss_pallas(output, target):
    """Generic mean(|output - target|) for two same-shaped arrays (L1 module)."""
    assert output.shape == target.shape, (output.shape, target.shape)
    n = output.size
    if n == 0:
        return jnp.float32(0.0)

    o_flat = jnp.ravel(output)   # free for contiguous inputs
    t_flat = jnp.ravel(target)

    # Keep only whole (8, 128) sublane groups in the kernel; the ragged tail
    # (< 1024 elems) is summed in plain JAX so the kernel never needs padding.
    rows8 = (n // (8 * LANES)) * 8
    main = rows8 * LANES
    if main < n:
        tail_sum = jnp.sum(jnp.abs(o_flat[main:].astype(jnp.float32)
                                   - t_flat[main:].astype(jnp.float32)))
    else:
        tail_sum = jnp.float32(0.0)

    if rows8 == 0:
        return (tail_sum / jnp.float32(n)).astype(jnp.float32)

    if main < n:
        o_main, t_main = o_flat[:main], t_flat[:main]
    else:
        o_main, t_main = o_flat, t_flat

    o3d = o_main.reshape(1, rows8, LANES)
    t3d = t_main.reshape(1, rows8, LANES)
    partials = _l1_partial_sums(o3d, t3d, t_batch_stride=1)
    total = jnp.sum(partials) + tail_sum
    return (total / jnp.float32(n)).astype(jnp.float32)


def l1_loss_from_flows(flow_preds, flows):
    """mean(|flow_preds - flows[:, 0]|) without materializing the [:, 0] slice."""
    B = flow_preds.shape[0]
    assert flows.ndim == flow_preds.ndim + 1
    assert flows.shape[0] == B and flows.shape[2:] == flow_preds.shape[1:], (
        flow_preds.shape, flows.shape)
    N = flows.shape[1]
    n = flow_preds.size
    if n == 0:
        return jnp.float32(0.0)

    per_b = math.prod(flow_preds.shape[1:]) if flow_preds.ndim > 1 else 1
    rows_b = per_b // LANES

    # Fast path: per-sample size is lane-aligned and the tile height will be a
    # multiple of 8 sublanes -> both reshapes below are free (contiguous), the
    # n == 0 selection happens in the index_map, zero extra HBM traffic.
    if (per_b % LANES == 0 and rows_b > 0
            and (rows_b % 8 == 0 or rows_b >= MAX_TILE_ROWS)):
        o3d = flow_preds.reshape(B, rows_b, LANES)
        t3d = flows.reshape(B * N, rows_b, LANES)
        partials = _l1_partial_sums(o3d, t3d, t_batch_stride=N)
        return (jnp.sum(partials) / jnp.float32(n)).astype(jnp.float32)

    # Fallback for exotic shapes (per-sample size not lane-aligned): this does
    # materialize the [:, 0] slice, but only for shapes real flow tensors never hit.
    return l1_loss_pallas(flow_preds, flows[:, 0])


def l1_loss_module(output_dict, target_dict):
    """Mirrors L1Loss.forward: dict unpacking is plain-JAX glue."""
    flow_preds = output_dict["flow_preds"]      # (B, C, H, W)
    flows = target_dict["flows"]                # (B, N, C, H, W)
    return l1_loss_from_flows(flow_preds, flows)


if __name__ == "__main__":
    key = jax.random.PRNGKey(0)
    k1, k2, k3, k4, k5, k6 = jax.random.split(key, 6)

    # Small shape consistent with the module: flow_preds (B, C, H, W),
    # flows (B, N, C, H, W).  Exercises the single-tile fast path.
    B, C, H, W = 2, 4, 16, 16
    flow_preds = jax.random.normal(k1, (B, C, H, W), dtype=jnp.float32)
    flows = jax.random.normal(k2, (B, 1, C, H, W), dtype=jnp.float32)
    loss = jax.block_until_ready(
        l1_loss_module({"flow_preds": flow_preds}, {"flows": flows}))
    ref = jnp.mean(jnp.abs(flow_preds - flows[:, 0]))
    assert jnp.allclose(loss, ref, rtol=1e-6, atol=1e-6), (loss, ref)

    # Larger check: multi-tile reduction, N > 1 (index-map n=0 selection) and
    # the pl.when-gated masked last tile (rows_b = 5120 = 4096 + 1024).
    B2, N2, C2, H2, W2 = 2, 2, 2, 512, 640
    o_big = jax.random.normal(k3, (B2, C2, H2, W2), dtype=jnp.float32)
    t_big = jax.random.normal(k4, (B2, N2, C2, H2, W2), dtype=jnp.float32)
    loss_big = jax.block_until_ready(
        l1_loss_module({"flow_preds": o_big}, {"flows": t_big}))
    ref_big = jnp.mean(jnp.abs(o_big - t_big[:, 0]))
    assert jnp.allclose(loss_big, ref_big, rtol=1e-5, atol=1e-5), (loss_big, ref_big)

    # Lane-unaligned fallback path: per-sample size 1200 is not a multiple of
    # 128, so the generic path flattens and sums the ragged tail in plain JAX.
    o_odd = jax.random.normal(k5, (2, 3, 20, 20), dtype=jnp.float32)
    t_odd = jax.random.normal(k6, (2, 2, 3, 20, 20), dtype=jnp.float32)
    loss_odd = jax.block_until_ready(
        l1_loss_module({"flow_preds": o_odd}, {"flows": t_odd}))
    ref_odd = jnp.mean(jnp.abs(o_odd - t_odd[:, 0]))
    assert jnp.allclose(loss_odd, ref_odd, rtol=1e-5, atol=1e-5), (loss_odd, ref_odd)

    print("KERNEL_OK")
</pallas_src>

<mosaic_0001>
module attributes {stable_mosaic.version = 11 : i64} {
  func.func @_l1_sum_kernel(%arg0: i32, %arg1: i32, %arg2: memref<1x8x128xf32, #tpu.memory_space<vmem>>, %arg3: memref<1x8x128xf32, #tpu.memory_space<vmem>>, %arg4: memref<8x128xf32, #tpu.memory_space<vmem>>) attributes {dimension_semantics = [#tpu.dimension_semantics<parallel>, #tpu.dimension_semantics<arbitrary>], iteration_bounds = array<i64: 2, 1>, scalar_prefetch = 0 : i64, scratch_operands = 0 : i64, tpu.core_type = #tpu.core_type<tc>, window_params = [{transform_indices = @transform_0, window_bounds = array<i64: 1, 8, 128>}, {transform_indices = @transform_1, window_bounds = array<i64: 1, 8, 128>}, {transform_indices = @transform_2, window_bounds = array<i64: 8, 128>}]} {
    %c0_i32 = arith.constant 0 : i32
    %0 = arith.cmpi eq, %arg1, %c0_i32 : i32
    %1 = arith.extui %0 : i1 to i32
    %c0_i32_0 = arith.constant 0 : i32
    %2 = arith.cmpi ne, %1, %c0_i32_0 : i32
    scf.if %2 {
      %cst_10 = arith.constant 0.000000e+00 : f32
      %14 = vector.broadcast %cst_10 : f32 to vector<8x128xf32>
      %c0_11 = arith.constant 0 : index
      %c0_12 = arith.constant 0 : index
      %15 = vector.load %arg4[%c0_11, %c0_12] : memref<8x128xf32, #tpu.memory_space<vmem>>, vector<8x128xf32>
      tpu.vector_store %arg4[%c0_11, %c0_12], %14 {strides = array<i32>} : memref<8x128xf32, #tpu.memory_space<vmem>>, vector<8x128xf32>,
    } else {
    }
    %c0 = arith.constant 0 : index
    %c0_1 = arith.constant 0 : index
    %c0_2 = arith.constant 0 : index
    %3 = vector.load %arg2[%c0, %c0_1, %c0_2] : memref<1x8x128xf32, #tpu.memory_space<vmem>>, vector<1x8x128xf32>
    %4 = vector.shape_cast %3 : vector<1x8x128xf32> to vector<8x128xf32>
    %c0_3 = arith.constant 0 : index
    %c0_4 = arith.constant 0 : index
    %c0_5 = arith.constant 0 : index
    %5 = vector.load %arg3[%c0_3, %c0_4, %c0_5] : memref<1x8x128xf32, #tpu.memory_space<vmem>>, vector<1x8x128xf32>
    %6 = vector.shape_cast %5 : vector<1x8x128xf32> to vector<8x128xf32>
    %7 = arith.subf %4, %6 : vector<8x128xf32>
    %8 = math.absf %7 : vector<8x128xf32>
    %c0_6 = arith.constant 0 : index
    %c0_7 = arith.constant 0 : index
    %9 = vector.load %arg4[%c0_6, %c0_7] : memref<8x128xf32, #tpu.memory_space<vmem>>, vector<8x128xf32>
    %10 = vector.shape_cast %8 : vector<8x128xf32> to vector<1x8x128xf32>
    %cst = arith.constant dense<0.000000e+00> : vector<8x128xf32>
    %11 = vector.multi_reduction <add>, %10, %cst [0] : vector<1x8x128xf32> to vector<8x128xf32>
    %12 = arith.addf %9, %11 : vector<8x128xf32>
    %c0_8 = arith.constant 0 : index
    %c0_9 = arith.constant 0 : index
    %13 = vector.load %arg4[%c0_8, %c0_9] : memref<8x128xf32, #tpu.memory_space<vmem>>, vector<8x128xf32>
    tpu.vector_store %arg4[%c0_8, %c0_9], %12 {strides = array<i32>} : memref<8x128xf32, #tpu.memory_space<vmem>>, vector<8x128xf32>,
    return
  }
  func.func @transform_0(%arg0: i32, %arg1: i32) -> (i32, i32, i32) {
    %c0_i32 = arith.constant 0 : i32
    %c0_i32_0 = arith.constant 0 : i32
    return %arg0, %arg1, %c0_i32 : i32, i32, i32
  }
  func.func @transform_1(%arg0: i32, %arg1: i32) -> (i32, i32, i32) {
    %c1_i32 = arith.constant 1 : i32
    %0 = arith.muli %arg0, %c1_i32 : i32
    %c0_i32 = arith.constant 0 : i32
    %c0_i32_0 = arith.constant 0 : i32
    return %0, %arg1, %c0_i32 : i32, i32, i32
  }
  func.func @transform_2(%arg0: i32, %arg1: i32) -> (i32, i32) {
    %c0_i32 = arith.constant 0 : i32
    %c0_i32_0 = arith.constant 0 : i32
    return %arg0, %c0_i32 : i32, i32
  }
}

</mosaic_0001>

<llo_original>
// kernel: tpu_custom_call.1
$region0: #{tpu_custom_call.1}
  #allocation0 [shape = 'u32[]', space=smem, size = 0x4, offset = 0x4, fixed_abs, tag = 'smem constant byte address 0x4 - core index']
  #allocation1 [shape = 'u32[144,128]{1,0:T(1,128)}', space=vmem, size = 0x12000, scoped, tag = 'internal scratch']
  %s0 = inlined_call_operand.hbm [shape: f32[2,8,128], index: 0, kind: input, shape index: {}]
  %s1 = inlined_call_operand.hbm [shape: f32[2,8,128], index: 1, kind: input, shape index: {}]
  %s2 = inlined_call_operand.hbm [shape: f32[16,128], index: 2, kind: output, shape index: {}]
  %s3 = sld [smem:[#allocation0]]
  $region53: #{tpu_custom_call.1} parent=0
    _
  %s5 = ssub.s32 1, %s3
  %s6 = scalar_select 0, %s5, %s3
  $region1: #{tpu_custom_call.1} parent=0
    #allocation2 [shape = 'u8[8192]{0}', space=vmem, size = 0x2000, scoped, tag = 'input window, operand 0']
    #allocation3 [shape = 's32[2]{0}', space=sflag, size = 0x8, scoped, tag = 'scoped memory for tpu_custom_call.1']
    #allocation4 [shape = 's32[2]{0}', space=sflag, size = 0x8, scoped, tag = 'scoped memory for tpu_custom_call.1']
    #allocation5 [shape = 'u8[8192]{0}', space=vmem, size = 0x2000, scoped, tag = 'input window, operand 1']
    #allocation6 [shape = 's32[2]{0}', space=sflag, size = 0x8, scoped, tag = 'scoped memory for tpu_custom_call.1']
    #allocation7 [shape = 'u8[8192]{0}', space=vmem, size = 0x2000, scoped, tag = 'output window, operand 0']
    %7 = vsyncpa [#allocation3], 0
    %s8 = scalar_lea.sflag [#allocation3], 1
    %9 = vsyncpa %s8, 0
    %10 = vsyncpa [#allocation6], 0
    %s11 = scalar_lea.sflag [#allocation6], 1
    %12 = vsyncpa %s11, 0
    %13 = vsyncpa [#allocation4], 0
    %s14 = scalar_lea.sflag [#allocation4], 1
    %15 = vsyncpa %s14, 0
    loop: start=0, step=1, limit=4
    $region2: #{tpu_custom_call.1} parent=1 // loop_pre_header
      _
    $region3: #{tpu_custom_call.1} parent=1 // loop_header
      %s17 = sphi 0, %s21
      %p18 = scmp.ge.s32.totalorder %s17, 4
      %s24 = sphi 0, %s36
      %s25 = sphi 0, %s32
      %s26 = sphi 0, %s24
      %s27 = sphi 0, %s25
      %s28 = sphi 0, %s26
      %s29 = sphi 0, %s27
      %s41 = sphi 0, %s43
      %s44 = sphi 0, %s41
      %s45 = sphi 0, %s44
      %s61 = sphi 0, %s45
      %s69 = sphi 0, %s71
      %s72 = sphi 0, %s69
      %s73 = sphi 0, %s72
      %s89 = sphi 0, %s73
      %s95 = sphi 0, %s97
      %s98 = sphi 0, %s95
      %s99 = sphi 0, %s98
      %s115 = sphi 0, %s99
    $region4: #{tpu_custom_call.1} parent=1 // loop_header_branch
      %20 = sbr.rel (%p18) target = $region8
    $region5: #{tpu_custom_call.1} parent=1 // loop_body
      %s22 = ssub.s32 %s17, 1
      %s23 = ssub.s32 %s17, 2
      %s30 = sadd.s32 1, %s25
      %p31 = scmp.ge.s32.totalorder %s30, 1
      %s32 = scalar_select %p31, 0, %s30
      %s33 = sadd.s32 1, %s24
      %s34 = scalar_select %p31, %s33, %s24
      %p35 = scmp.ge.s32.totalorder %s34, 2
      %s36 = scalar_select %p35, 0, %s34
      %s37 = ssub.s32 %s24, %s36
      %s38 = ssub.s32 %s25, %s32
      %s39 = sor.u32 %s37, %s38
      %p40 = scmp.eq.s32.totalorder %s39, 0
      %s42 = sadd.s32 %s41, 1
      %s43 = scalar_select %p40, %s41, %s42
      %p46 = pneg %p40
      %p47 = scmp.eq.s32.totalorder %s17, 1
      %p48 = por %p46, %p47
      %p49 = scmp.ne.s32.totalorder %s41, %s44
      %p50 = scmp.eq.s32.totalorder %s17, 0
      %p51 = por %p49, %p50
      %p52 = scmp.ne.s32.totalorder %s41, %s44
      %p53 = scmp.eq.s32.totalorder %s22, 1
      %p54 = por %p52, %p53
      %p55 = scmp.ne.s32.totalorder %s44, %s45
      %p56 = scmp.eq.s32.totalorder %s22, 0
      %p57 = por %p55, %p56
      %p58 = scmp.ne.s32.totalorder %s44, %s45
      %p59 = scmp.eq.s32.totalorder %s23, 1
      %p60 = por %p58, %p59
      %p62 = scmp.ne.s32.totalorder %s45, %s61
      %p63 = scmp.eq.s32.totalorder %s23, 0
      %p64 = por %p62, %p63
      %s65 = ssub.s32 %s24, %s36
      %s66 = ssub.s32 %s25, %s32
      %s67 = sor.u32 %s65, %s66
      %p68 = scmp.eq.s32.totalorder %s67, 0
      %s70 = sadd.s32 %s69, 1
      %s71 = scalar_select %p68, %s69, %s70
      %p74 = pneg %p68
      %p75 = scmp.eq.s32.totalorder %s17, 1
      %p76 = por %p74, %p75
      %p77 = scmp.ne.s32.totalorder %s69, %s72
      %p78 = scmp.eq.s32.totalorder %s17, 0
      %p79 = por %p77, %p78
      %p80 = scmp.ne.s32.totalorder %s69, %s72
      %p81 = scmp.eq.s32.totalorder %s22, 1
      %p82 = por %p80, %p81
      %p83 = scmp.ne.s32.totalorder %s72, %s73
      %p84 = scmp.eq.s32.totalorder %s22, 0
      %p85 = por %p83, %p84
      %p86 = scmp.ne.s32.totalorder %s72, %s73
      %p87 = scmp.eq.s32.totalorder %s23, 1
      %p88 = por %p86, %p87
      %p90 = scmp.ne.s32.totalorder %s73, %s89
      %p91 = scmp.eq.s32.totalorder %s23, 0
      %p92 = por %p90, %p91
      %s93 = ssub.s32 %s24, %s36
      %p94 = scmp.eq.s32.totalorder %s93, 0
      %s96 = sadd.s32 %s95, 1
      %s97 = scalar_select %p94, %s95, %s96
      %p100 = pneg %p94
      %p101 = scmp.eq.s32.totalorder %s17, 1
      %p102 = por %p100, %p101
      %p103 = scmp.ne.s32.totalorder %s95, %s98
      %p104 = scmp.eq.s32.totalorder %s17, 0
      %p105 = por %p103, %p104
      %p106 = scmp.ne.s32.totalorder %s95, %s98
      %p107 = scmp.eq.s32.totalorder %s22, 1
      %p108 = por %p106, %p107
      %p109 = scmp.ne.s32.totalorder %s98, %s99
      %p110 = scmp.eq.s32.totalorder %s22, 0
      %p111 = por %p109, %p110
      %p112 = scmp.ne.s32.totalorder %s98, %s99
      %p113 = scmp.eq.s32.totalorder %s23, 1
      %p114 = por %p112, %p113
      %p116 = scmp.ne.s32.totalorder %s99, %s115
      %p117 = scmp.eq.s32.totalorder %s23, 0
      %p118 = por %p116, %p117
      %p119 = scmp.le.s32.totalorder 1, %s17
      %p120 = scmp.lt.s32.totalorder %s17, 3
      %p121 = pnand %p119, %p120
      %p122 = pneg %p121
      // Predicated region
      $region9: #{tpu_custom_call.1} parent=5 // pred_check
        _
      $region10: #{tpu_custom_call.1} parent=5 // pred_check_branch
        %124 = sbr.rel (%p121) target = $region12
      $region11: #{tpu_custom_call.1} parent=5 // pred_region
        %s125 = ssub.s32 %s17, 1
      $region12: #{tpu_custom_call.1} parent=5 // pred_fallthru
        _
      %p126 = scmp.lt.s32.totalorder %s17, 2
      // Predicated region
      $region13: #{tpu_custom_call.1} parent=5 // pred_check
        %p127 = pneg %p126
      $region14: #{tpu_custom_call.1} parent=5 // pred_check_branch
        %129 = sbr.rel (%p127) target = $region16
      $region15: #{tpu_custom_call.1} parent=5 // pred_region
        // Predicated region
        $region17: #{tpu_custom_call.1} parent=15 // pred_check
          %p130 = pneg %p51
        $region18: #{tpu_custom_call.1} parent=15 // pred_check_branch
          %132 = sbr.rel (%p130) target = $region20
        $region19: #{tpu_custom_call.1} parent=15 // pred_region
          %s133 = sand.u32 %s41, 1
          %s134 = scalar_lea.sflag [#allocation3], %s133
          %s135 = sand.u32 %s41, 1
          %s136 = smul.addr %s135, 8
          %s137 = scalar_lea.vmem [#allocation2], %s136
          %s139 = ssub.s32 128, 128
          %140 = vsyncadd %s134, %s139
          %s141 = sadd.s32 %s25, %s24
          %s142 = smul.addr %s141, 128
          %s143 = scalar_lea.hbm %s0, %s142
          %s145 = sshll.u32 %s137, 4
          %s146 = int_to_ptr.vmem [resolvable:$true] %s145
          %148 = dma.hbm_to_vmem [thread:$0]  %s143, 128, %s146, %s134
        $region20: #{tpu_custom_call.1} parent=15 // pred_fallthru
          _
        // Predicated region
        $region21: #{tpu_custom_call.1} parent=15 // pred_check
          %p149 = pneg %p79
        $region22: #{tpu_custom_call.1} parent=15 // pred_check_branch
          %151 = sbr.rel (%p149) target = $region24
        $region23: #{tpu_custom_call.1} parent=15 // pred_region
          %s152 = sand.u32 %s69, 1
          %s153 = scalar_lea.sflag [#allocation6], %s152
          %s154 = sand.u32 %s69, 1
          %s155 = smul.addr %s154, 8
          %s156 = scalar_lea.vmem [#allocation5], %s155
          %s158 = ssub.s32 128, 128
          %159 = vsyncadd %s153, %s158
          %s160 = sadd.s32 %s25, %s24
          %s161 = smul.addr %s160, 128
          %s162 = scalar_lea.hbm %s1, %s161
          %s164 = sshll.u32 %s156, 4
          %s165 = int_to_ptr.vmem [resolvable:$true] %s164
          %167 = dma.hbm_to_vmem [thread:$0]  %s162, 128, %s165, %s153
        $region24: #{tpu_custom_call.1} parent=15 // pred_fallthru
          _
      $region16: #{tpu_custom_call.1} parent=5 // pred_fallthru
        _
      %p168 = scmp.le.s32.totalorder 1, %s17
      %p169 = scmp.lt.s32.totalorder %s17, 3
      %p170 = pnand %p168, %p169
      %p171 = pneg %p170
      // Predicated region
      $region25: #{tpu_custom_call.1} parent=5 // pred_check
        _
      $region26: #{tpu_custom_call.1} parent=5 // pred_check_branch
        %173 = sbr.rel (%p170) target = $region28
      $region27: #{tpu_custom_call.1} parent=5 // pred_region
        %s174 = ssub.s32 %s17, 1
        %s175 = sand.u32 %s44, 1
        %s176 = scalar_lea.sflag [#allocation3], %s175
        %s177 = sand.u32 %s44, 1
        %s178 = smul.addr %s177, 8
        %s179 = scalar_lea.vmem [#allocation2], %s178
        // Predicated region
        $region29: #{tpu_custom_call.1} parent=27 // pred_check
          %p180 = pneg %p57
        $region30: #{tpu_custom_call.1} parent=27 // pred_check_branch
          %182 = sbr.rel (%p180) target = $region32
        $region31: #{tpu_custom_call.1} parent=27 // pred_region
          %183 = dma.done %s176, 128
        $region32: #{tpu_custom_call.1} parent=27 // pred_fallthru
          _
        %s184 = sand.u32 %s72, 1
        %s185 = scalar_lea.sflag [#allocation6], %s184
        %s186 = sand.u32 %s72, 1
        %s187 = smul.addr %s186, 8
        %s188 = scalar_lea.vmem [#allocation5], %s187
        // Predicated region
        $region33: #{tpu_custom_call.1} parent=27 // pred_check
          %p189 = pneg %p85
        $region34: #{tpu_custom_call.1} parent=27 // pred_check_branch
          %191 = sbr.rel (%p189) target = $region36
        $region35: #{tpu_custom_call.1} parent=27 // pred_region
          %192 = dma.done %s185, 128
        $region36: #{tpu_custom_call.1} parent=27 // pred_fallthru
          _
        %s193 = sand.u32 %s44, 1
        %s194 = scalar_lea.sflag [#allocation3], %s193
        %s195 = sand.u32 %s44, 1
        %s196 = smul.addr %s195, 8
        %s197 = scalar_lea.vmem [#allocation2], %s196
        %p198 = pneg %p57
        %p199 = pneg %p54
        %s200 = sand.u32 %s72, 1
        %s201 = scalar_lea.sflag [#allocation6], %s200
        %s202 = sand.u32 %s72, 1
        %s203 = smul.addr %s202, 8
        %s204 = scalar_lea.vmem [#allocation5], %s203
        %p205 = pneg %p85
        %p206 = pneg %p82
        %p207 = pneg %p111
        %p208 = pneg %p108
        %s209 = sand.u32 %s98, 1
        %s210 = scalar_lea.sflag [#allocation4], %s209
        %s211 = sand.u32 %s98, 1
        %s212 = smul.addr %s211, 8
        %s213 = scalar_lea.vmem [#allocation7], %s212
        %p214 = scmp.eq.s32.totalorder %s27, 0
        // Predicated region
        $region37: #{tpu_custom_call.1} parent=27 // pred_check
          %p215 = pneg %p214
        $region38: #{tpu_custom_call.1} parent=27 // pred_check_branch
          %217 = sbr.rel (%p215) target = $region40
        $region39: #{tpu_custom_call.1} parent=27 // pred_region
          %218 = vst [vmem:[%s213] sm:$0xff] 0.0
        $region40: #{tpu_custom_call.1} parent=27 // pred_fallthru
          _
        %v219 = vld [vmem:[%s179] sm:$0xff]
        %v220 = vld [vmem:[%s188] sm:$0xff]
        %v221 = vsub.f32 %v219, %v220
        %v222 = vand.u32 2147483647, %v221
        %v223 = vld [vmem:[%s213] sm:$0xff]
        %v224 = vadd.f32 %v222, 0.0
        %v225 = vadd.f32 %v223, %v224
        %226 = vst [vmem:[%s213] sm:$0xff] %v225
        %s227 = sand.u32 %s98, 1
        %s228 = scalar_lea.sflag [#allocation4], %s227
        %s229 = sand.u32 %s98, 1
        %s230 = smul.addr %s229, 8
        %s231 = scalar_lea.vmem [#allocation7], %s230
        // Predicated region
        $region41: #{tpu_custom_call.1} parent=27 // pred_check
          %p232 = pneg %p108
        $region42: #{tpu_custom_call.1} parent=27 // pred_check_branch
          %234 = sbr.rel (%p232) target = $region44
        $region43: #{tpu_custom_call.1} parent=27 // pred_region
          %s236 = ssub.s32 128, 128
          %237 = vsyncadd %s228, %s236
          %s238 = smul.addr %s26, 128
          %s239 = scalar_lea.hbm %s2, %s238
          %s241 = sshll.u32 %s231, 4
          %s242 = int_to_ptr.vmem [resolvable:$true] %s241
          %244 = dma.vmem_to_hbm [thread:$0]  %s242, 128, %s239, %s228
        $region44: #{tpu_custom_call.1} parent=27 // pred_fallthru
          _
      $region28: #{tpu_custom_call.1} parent=5 // pred_fallthru
        _
      %p245 = scmp.le.s32.totalorder 2, %s17
      // Predicated region
      $region45: #{tpu_custom_call.1} parent=5 // pred_check
        %p246 = pneg %p245
      $region46: #{tpu_custom_call.1} parent=5 // pred_check_branch
        %248 = sbr.rel (%p246) target = $region48
      $region47: #{tpu_custom_call.1} parent=5 // pred_region
        %s249 = ssub.s32 %s17, 2
        // Predicated region
        $region49: #{tpu_custom_call.1} parent=47 // pred_check
          %p250 = pneg %p114
        $region50: #{tpu_custom_call.1} parent=47 // pred_check_branch
          %252 = sbr.rel (%p250) target = $region52
        $region51: #{tpu_custom_call.1} parent=47 // pred_region
          %s253 = sand.u32 %s99, 1
          %s254 = scalar_lea.sflag [#allocation4], %s253
          %s255 = sand.u32 %s99, 1
          %s256 = smul.addr %s255, 8
          %s257 = scalar_lea.vmem [#allocation7], %s256
          %258 = dma.done %s254, 128
        $region52: #{tpu_custom_call.1} parent=47 // pred_fallthru
          _
      $region48: #{tpu_custom_call.1} parent=5 // pred_fallthru
        _
    $region6: #{tpu_custom_call.1} parent=1 // loop_footer
      %s21 = sadd.s32 1, %s17
    $region7: #{tpu_custom_call.1} parent=1 // loop_footer_branch
      %16 = sbr.rel target = $region3
    $region8: #{tpu_custom_call.1} parent=1 // loop_exit
      _
    %259 = vsyncpa [#allocation3], 1
    %s260 = scalar_lea.sflag [#allocation3], 1
    %261 = vsyncpa %s260, 1
    %262 = vsyncpa [#allocation6], 1
    %s263 = scalar_lea.sflag [#allocation6], 1
    %264 = vsyncpa %s263, 1
    %265 = vsyncpa [#allocation4], 1
    %s266 = scalar_lea.sflag [#allocation4], 1
    %267 = vsyncpa %s266, 1

</llo_original>
